<compile_context>
chip_gen: v6e
topology: v6e:2x2x1
jax: 0.10.0
libtpu: 0.0.40
codegen_flags: <defaults>
</compile_context>

<pallas_src>
from functools import partial

import jax
import jax.numpy as jnp
from jax.experimental import pallas as pl
from jax.experimental.pallas import tpu as pltpu

LANE = 128            # vector-lane width: last dim of every block
ROW_ALIGN = 32        # keeps 1-byte gt/lt output tiles on native (32,128) stores
TILE_ROWS = 4096      # 4096x128 f32 = 2 MiB/stream; 6 f32 + 2 x 1-byte streams,
                      # double-buffered ~= 26 MiB working set.
VMEM_LIMIT_BYTES = 40 * 1024 * 1024   # > v5e's 16 MiB default scoped VMEM,
                                      # < v7x's 64 MiB physical per-TC VMEM.


def _round_up(x, m):
    return (x + m - 1) // m * m


def _elementwise_kernel(a_ref, b_ref,
                        add_ref, sub_ref, mul_ref, div_ref, gt_ref, lt_ref):
    a = a_ref[...]
    b = b_ref[...]
    add_ref[...] = a + b
    sub_ref[...] = a - b
    mul_ref[...] = a * b
    div_ref[...] = a / (b + 1e-08)               # matches PtModule: x0 / (x1 + 1e-8)
    gt_ref[...] = (a > b).astype(gt_ref.dtype)   # bool when supported, else int8
    lt_ref[...] = (a < b).astype(lt_ref.dtype)


def _run_slab(a2, b2, cmp_dtype):
    """Run the kernel on a lane-dense (rows, 128) slab; returns the 6 slab outputs."""
    rows = a2.shape[0]
    if rows >= 2 * ROW_ALIGN:
        # >= 2 grid steps so both v7x TensorCores participate; tile_r stays a
        # multiple of 32 so the 1-byte outputs use unmasked (32,128) stores.
        tile_r = min(TILE_ROWS, _round_up(pl.cdiv(rows, 2), ROW_ALIGN))
    else:
        tile_r = rows                      # single full-extent block (small input)

    grid = (pl.cdiv(rows, tile_r),)
    spec = pl.BlockSpec((tile_r, LANE), lambda i: (i, 0))
    f32 = jax.ShapeDtypeStruct((rows, LANE), a2.dtype)
    cmp = jax.ShapeDtypeStruct((rows, LANE), cmp_dtype)

    return pl.pallas_call(
        _elementwise_kernel,
        out_shape=(f32, f32, f32, f32, cmp, cmp),
        grid=grid,
        in_specs=[spec, spec],
        out_specs=(spec,) * 6,
        compiler_params=pltpu.CompilerParams(
            dimension_semantics=("parallel",),
            vmem_limit_bytes=VMEM_LIMIT_BYTES),
    )(a2, b2)


def _jnp_elementwise(a, b, cmp_dtype):
    # Only used for the <128-element ragged tail (and empty inputs).
    return [a + b, a - b, a * b, a / (b + 1e-08),
            (a > b).astype(cmp_dtype), (a < b).astype(cmp_dtype)]


@partial(jax.jit, static_argnames=("emit_bool",))
def _forward_jit(x0, x1, emit_bool):
    cmp_dtype = jnp.bool_ if emit_bool else jnp.int8
    orig_shape = x0.shape
    total = x0.size
    a_flat = x0.reshape(-1)
    b_flat = x1.reshape(-1)

    if total > 0 and total % LANE == 0:
        # Fast path: free reshape to the (rows, 128) slab and free reshape back.
        rows = total // LANE
        outs = _run_slab(a_flat.reshape(rows, LANE),
                         b_flat.reshape(rows, LANE), cmp_dtype)
        outs = [o.reshape(orig_shape) for o in outs]
    else:
        # Ragged path: kernel on the 128-aligned bulk, plain jnp on the tiny tail.
        bulk = (total // LANE) * LANE
        tail_outs = _jnp_elementwise(a_flat[bulk:], b_flat[bulk:], cmp_dtype)
        if bulk:
            rows = bulk // LANE
            bulk_outs = _run_slab(a_flat[:bulk].reshape(rows, LANE),
                                  b_flat[:bulk].reshape(rows, LANE), cmp_dtype)
            outs = [jnp.concatenate([bo.reshape(-1), to]).reshape(orig_shape)
                    for bo, to in zip(bulk_outs, tail_outs)]
        else:
            outs = [to.reshape(orig_shape) for to in tail_outs]

    add, sub, mul, div, gt, lt = outs
    if not emit_bool:        # fallback only: one extra convert pass over gt/lt
        gt = gt.astype(jnp.bool_)
        lt = lt.astype(jnp.bool_)
    return {'add': add, 'sub': sub, 'mul': mul, 'div': div, 'gt': gt, 'lt': lt}


_EMIT_BOOL = None   # lazily probed: can Mosaic store bool outputs directly?


def _probe_bool_outputs():
    """Probe once whether bool pallas outputs (incl. partial blocks) lower & run."""
    def k(x_ref, o_ref):
        o_ref[...] = x_ref[...] > 0.0
    try:
        x = jnp.ones((40, LANE), jnp.float32)     # 40 rows -> partial 2nd block
        out = pl.pallas_call(
            k,
            out_shape=jax.ShapeDtypeStruct((40, LANE), jnp.bool_),
            grid=(2,),
            in_specs=[pl.BlockSpec((ROW_ALIGN, LANE), lambda i: (i, 0))],
            out_specs=pl.BlockSpec((ROW_ALIGN, LANE), lambda i: (i, 0)),
        )(x)
        jax.block_until_ready(out)
        return bool(jnp.all(out))
    except Exception:
        return False


def pt_module_forward(x0, x1):
    """Reproduces PtModule.forward: returns dict with add/sub/mul/div/gt/lt."""
    global _EMIT_BOOL
    assert x0.shape == x1.shape and x0.dtype == x1.dtype
    if _EMIT_BOOL is None:
        _EMIT_BOOL = _probe_bool_outputs()
    return _forward_jit(x0, x1, emit_bool=_EMIT_BOOL)


if __name__ == "__main__":
    key = jax.random.PRNGKey(0)
    k0, k1 = jax.random.split(key)
    shape = (2, 4, 16, 16)  # NCHW-style small shape
    x0 = jax.random.normal(k0, shape, dtype=jnp.float32)
    x1 = jax.random.normal(k1, shape, dtype=jnp.float32)

    results = pt_module_forward(x0, x1)
    jax.block_until_ready(results)

    # Sanity check against plain JAX reference (same semantics as PtModule).
    ref = {
        'add': x0 + x1,
        'sub': x0 - x1,
        'mul': x0 * x1,
        'div': x0 / (x1 + 1e-08),
        'gt': x0 > x1,
        'lt': x0 < x1,
    }
    for k in ref:
        assert results[k].dtype == ref[k].dtype, (k, results[k].dtype, ref[k].dtype)
        if results[k].dtype == jnp.bool_:
            assert bool(jnp.all(results[k] == ref[k])), k
        else:
            assert bool(jnp.allclose(results[k], ref[k], rtol=1e-6, atol=1e-6)), k

    print("KERNEL_OK")
</pallas_src>

<mosaic_0001>
module attributes {stable_mosaic.version = 11 : i64} {
  func.func @k(%arg0: i32, %arg1: memref<32x128xf32, #tpu.memory_space<vmem>>, %arg2: memref<32x128xi32, #tpu.memory_space<vmem>>) attributes {dimension_semantics = [#tpu.dimension_semantics<arbitrary>], iteration_bounds = array<i64: 2>, scalar_prefetch = 0 : i64, scratch_operands = 0 : i64, tpu.core_type = #tpu.core_type<tc>, window_params = [{transform_indices = @transform_0, window_bounds = array<i64: 32, 128>}, {transform_indices = @transform_1, window_bounds = array<i64: 32, 128>}]} {
    %c0 = arith.constant 0 : index
    %c0_0 = arith.constant 0 : index
    %0 = vector.load %arg1[%c0, %c0_0] : memref<32x128xf32, #tpu.memory_space<vmem>>, vector<32x128xf32>
    %cst = arith.constant 0.000000e+00 : f32
    %1 = vector.broadcast %cst : f32 to vector<32x128xf32>
    %2 = arith.cmpf ogt, %0, %1 : vector<32x128xf32>
    %c0_1 = arith.constant 0 : index
    %c0_2 = arith.constant 0 : index
    %3 = vector.load %arg2[%c0_1, %c0_2] : memref<32x128xi32, #tpu.memory_space<vmem>>, vector<32x128xi32>
    %4 = arith.extui %2 : vector<32x128xi1> to vector<32x128xi32>
    %cst_3 = arith.constant dense<0> : vector<32x128xi32>
    %5 = arith.cmpi ne, %3, %cst_3 : vector<32x128xi32>
    tpu.vector_store %arg2[%c0_1, %c0_2], %4 {strides = array<i32>} : memref<32x128xi32, #tpu.memory_space<vmem>>, vector<32x128xi32>,
    return
  }
  func.func @transform_0(%arg0: i32) -> (i32, i32) {
    %c0_i32 = arith.constant 0 : i32
    %c0_i32_0 = arith.constant 0 : i32
    return %arg0, %c0_i32 : i32, i32
  }
  func.func @transform_1(%arg0: i32) -> (i32, i32) {
    %c0_i32 = arith.constant 0 : i32
    %c0_i32_0 = arith.constant 0 : i32
    return %arg0, %c0_i32 : i32, i32
  }
}

module attributes {stable_mosaic.version = 11 : i64} {
  func.func @_elementwise_kernel(%arg0: i32, %arg1: memref<16x128xf32, #tpu.memory_space<vmem>>, %arg2: memref<16x128xf32, #tpu.memory_space<vmem>>, %arg3: memref<16x128xf32, #tpu.memory_space<vmem>>, %arg4: memref<16x128xf32, #tpu.memory_space<vmem>>, %arg5: memref<16x128xf32, #tpu.memory_space<vmem>>, %arg6: memref<16x128xf32, #tpu.memory_space<vmem>>, %arg7: memref<16x128xi8, #tpu.memory_space<vmem>>, %arg8: memref<16x128xi8, #tpu.memory_space<vmem>>) attributes {dimension_semantics = [#tpu.dimension_semantics<parallel>], iteration_bounds = array<i64: 1>, scalar_prefetch = 0 : i64, scratch_operands = 0 : i64, tpu.core_type = #tpu.core_type<tc>, window_params = [{transform_indices = @transform_0, window_bounds = array<i64: 16, 128>}, {transform_indices = @transform_1, window_bounds = array<i64: 16, 128>}, {transform_indices = @transform_2, window_bounds = array<i64: 16, 128>}, {transform_indices = @transform_3, window_bounds = array<i64: 16, 128>}, {transform_indices = @transform_4, window_bounds = array<i64: 16, 128>}, {transform_indices = @transform_5, window_bounds = array<i64: 16, 128>}, {transform_indices = @transform_6, window_bounds = array<i64: 16, 128>}, {transform_indices = @transform_7, window_bounds = array<i64: 16, 128>}]} {
    %c0 = arith.constant 0 : index
    %c0_0 = arith.constant 0 : index
    %0 = vector.load %arg1[%c0, %c0_0] : memref<16x128xf32, #tpu.memory_space<vmem>>, vector<16x128xf32>
    %c0_1 = arith.constant 0 : index
    %c0_2 = arith.constant 0 : index
    %1 = vector.load %arg2[%c0_1, %c0_2] : memref<16x128xf32, #tpu.memory_space<vmem>>, vector<16x128xf32>
    %2 = arith.addf %0, %1 : vector<16x128xf32>
    %c0_3 = arith.constant 0 : index
    %c0_4 = arith.constant 0 : index
    %3 = vector.load %arg3[%c0_3, %c0_4] : memref<16x128xf32, #tpu.memory_space<vmem>>, vector<16x128xf32>
    tpu.vector_store %arg3[%c0_3, %c0_4], %2 {strides = array<i32>} : memref<16x128xf32, #tpu.memory_space<vmem>>, vector<16x128xf32>,
    %4 = arith.subf %0, %1 : vector<16x128xf32>
    %c0_5 = arith.constant 0 : index
    %c0_6 = arith.constant 0 : index
    %5 = vector.load %arg4[%c0_5, %c0_6] : memref<16x128xf32, #tpu.memory_space<vmem>>, vector<16x128xf32>
    tpu.vector_store %arg4[%c0_5, %c0_6], %4 {strides = array<i32>} : memref<16x128xf32, #tpu.memory_space<vmem>>, vector<16x128xf32>,
    %6 = arith.mulf %0, %1 : vector<16x128xf32>
    %c0_7 = arith.constant 0 : index
    %c0_8 = arith.constant 0 : index
    %7 = vector.load %arg5[%c0_7, %c0_8] : memref<16x128xf32, #tpu.memory_space<vmem>>, vector<16x128xf32>
    tpu.vector_store %arg5[%c0_7, %c0_8], %6 {strides = array<i32>} : memref<16x128xf32, #tpu.memory_space<vmem>>, vector<16x128xf32>,
    %cst = arith.constant 9.99999993E-9 : f32
    %8 = vector.broadcast %cst : f32 to vector<16x128xf32>
    %9 = arith.addf %1, %8 : vector<16x128xf32>
    %10 = arith.divf %0, %9 : vector<16x128xf32>
    %c0_9 = arith.constant 0 : index
    %c0_10 = arith.constant 0 : index
    %11 = vector.load %arg6[%c0_9, %c0_10] : memref<16x128xf32, #tpu.memory_space<vmem>>, vector<16x128xf32>
    tpu.vector_store %arg6[%c0_9, %c0_10], %10 {strides = array<i32>} : memref<16x128xf32, #tpu.memory_space<vmem>>, vector<16x128xf32>,
    %12 = arith.cmpf ogt, %0, %1 : vector<16x128xf32>
    %13 = arith.extui %12 : vector<16x128xi1> to vector<16x128xi8>
    %c0_11 = arith.constant 0 : index
    %c0_12 = arith.constant 0 : index
    %14 = vector.load %arg7[%c0_11, %c0_12] : memref<16x128xi8, #tpu.memory_space<vmem>>, vector<16x128xi8>
    tpu.vector_store %arg7[%c0_11, %c0_12], %13 {strides = array<i32>} : memref<16x128xi8, #tpu.memory_space<vmem>>, vector<16x128xi8>,
    %15 = arith.cmpf olt, %0, %1 : vector<16x128xf32>
    %16 = arith.extui %15 : vector<16x128xi1> to vector<16x128xi8>
    %c0_13 = arith.constant 0 : index
    %c0_14 = arith.constant 0 : index
    %17 = vector.load %arg8[%c0_13, %c0_14] : memref<16x128xi8, #tpu.memory_space<vmem>>, vector<16x128xi8>
    tpu.vector_store %arg8[%c0_13, %c0_14], %16 {strides = array<i32>} : memref<16x128xi8, #tpu.memory_space<vmem>>, vector<16x128xi8>,
    return
  }
  func.func @transform_0(%arg0: i32) -> (i32, i32) {
    %c0_i32 = arith.constant 0 : i32
    %c0_i32_0 = arith.constant 0 : i32
    return %arg0, %c0_i32 : i32, i32
  }
  func.func @transform_1(%arg0: i32) -> (i32, i32) {
    %c0_i32 = arith.constant 0 : i32
    %c0_i32_0 = arith.constant 0 : i32
    return %arg0, %c0_i32 : i32, i32
  }
  func.func @transform_2(%arg0: i32) -> (i32, i32) {
    %c0_i32 = arith.constant 0 : i32
    %c0_i32_0 = arith.constant 0 : i32
    return %arg0, %c0_i32 : i32, i32
  }
  func.func @transform_3(%arg0: i32) -> (i32, i32) {
    %c0_i32 = arith.constant 0 : i32
    %c0_i32_0 = arith.constant 0 : i32
    return %arg0, %c0_i32 : i32, i32
  }
  func.func @transform_4(%arg0: i32) -> (i32, i32) {
    %c0_i32 = arith.constant 0 : i32
    %c0_i32_0 = arith.constant 0 : i32
    return %arg0, %c0_i32 : i32, i32
  }
  func.func @transform_5(%arg0: i32) -> (i32, i32) {
    %c0_i32 = arith.constant 0 : i32
    %c0_i32_0 = arith.constant 0 : i32
    return %arg0, %c0_i32 : i32, i32
  }
  func.func @transform_6(%arg0: i32) -> (i32, i32) {
    %c0_i32 = arith.constant 0 : i32
    %c0_i32_0 = arith.constant 0 : i32
    return %arg0, %c0_i32 : i32, i32
  }
  func.func @transform_7(%arg0: i32) -> (i32, i32) {
    %c0_i32 = arith.constant 0 : i32
    %c0_i32_0 = arith.constant 0 : i32
    return %arg0, %c0_i32 : i32, i32
  }
}

</mosaic_0001>

<llo_original>
// kernel: tpu_custom_call.1
$region0: #{tpu_custom_call.1}
  #allocation0 [shape = 'u32[]', space=smem, size = 0x4, offset = 0x4, fixed_abs, tag = 'smem constant byte address 0x4 - core index']
  #allocation1 [shape = 'u32[144,128]{1,0:T(1,128)}', space=vmem, size = 0x12000, scoped, tag = 'internal scratch']
  %s0 = inlined_call_operand.hbm [shape: f32[40,128], index: 0, kind: input, shape index: {}]
  %s1 = inlined_call_operand.vmem [shape: s32[40,128], index: 1, kind: output, shape index: {}]
  %s2 = sld [smem:[#allocation0]]
  $region89: #{tpu_custom_call.1} parent=0
    _
  %s4 = ssub.s32 1, %s2
  %s5 = scalar_select 0, %s4, %s2
  $region1: #{tpu_custom_call.1} parent=0
    #allocation2 [shape = 'u8[32768]{0}', space=vmem, size = 0x8000, scoped, tag = 'input window, operand 0']
    #allocation3 [shape = 's32[2]{0}', space=sflag, size = 0x8, scoped, tag = 'scoped memory for tpu_custom_call.1']
    #allocation4 [shape = 'u8[32768]{0}', space=vmem, size = 0x8000, scoped, tag = 'output window, operand 0']
    %6 = vsyncpa [#allocation3], 0
    %s7 = scalar_lea.sflag [#allocation3], 1
    %8 = vsyncpa %s7, 0
    loop: start=0, step=1, limit=4
    $region2: #{tpu_custom_call.1} parent=1 // loop_pre_header
      _
    $region3: #{tpu_custom_call.1} parent=1 // loop_header
      %s10 = sphi 0, %s14
      %p11 = scmp.ge.s32.totalorder %s10, 4
      %s20 = sphi 0, %s22
      %s23 = sphi 0, %s20
      %s24 = sphi 0, %s23
      %s40 = sphi 0, %s24
      %s46 = sphi 0, %s48
      %s49 = sphi 0, %s46
      %s50 = sphi 0, %s49
      %s66 = sphi 0, %s50
    $region4: #{tpu_custom_call.1} parent=1 // loop_header_branch
      %13 = sbr.rel (%p11) target = $region8
    $region5: #{tpu_custom_call.1} parent=1 // loop_body
      %s15 = ssub.s32 %s10, 1
      %s16 = ssub.s32 %s10, 2
      %s17 = sadd.s32 %s10, 1
      %s18 = ssub.s32 %s10, %s17
      %p19 = scmp.eq.s32.totalorder %s18, 0
      %s21 = sadd.s32 %s20, 1
      %s22 = scalar_select %p19, %s20, %s21
      %p25 = pneg %p19
      %p26 = scmp.eq.s32.totalorder %s10, 1
      %p27 = por %p25, %p26
      %p28 = scmp.ne.s32.totalorder %s20, %s23
      %p29 = scmp.eq.s32.totalorder %s10, 0
      %p30 = por %p28, %p29
      %p31 = scmp.ne.s32.totalorder %s20, %s23
      %p32 = scmp.eq.s32.totalorder %s15, 1
      %p33 = por %p31, %p32
      %p34 = scmp.ne.s32.totalorder %s23, %s24
      %p35 = scmp.eq.s32.totalorder %s15, 0
      %p36 = por %p34, %p35
      %p37 = scmp.ne.s32.totalorder %s23, %s24
      %p38 = scmp.eq.s32.totalorder %s16, 1
      %p39 = por %p37, %p38
      %p41 = scmp.ne.s32.totalorder %s24, %s40
      %p42 = scmp.eq.s32.totalorder %s16, 0
      %p43 = por %p41, %p42
      %s44 = ssub.s32 %s10, %s17
      %p45 = scmp.eq.s32.totalorder %s44, 0
      %s47 = sadd.s32 %s46, 1
      %s48 = scalar_select %p45, %s46, %s47
      %p51 = pneg %p45
      %p52 = scmp.eq.s32.totalorder %s10, 1
      %p53 = por %p51, %p52
      %p54 = scmp.ne.s32.totalorder %s46, %s49
      %p55 = scmp.eq.s32.totalorder %s10, 0
      %p56 = por %p54, %p55
      %p57 = scmp.ne.s32.totalorder %s46, %s49
      %p58 = scmp.eq.s32.totalorder %s15, 1
      %p59 = por %p57, %p58
      %p60 = scmp.ne.s32.totalorder %s49, %s50
      %p61 = scmp.eq.s32.totalorder %s15, 0
      %p62 = por %p60, %p61
      %p63 = scmp.ne.s32.totalorder %s49, %s50
      %p64 = scmp.eq.s32.totalorder %s16, 1
      %p65 = por %p63, %p64
      %p67 = scmp.ne.s32.totalorder %s50, %s66
      %p68 = scmp.eq.s32.totalorder %s16, 0
      %p69 = por %p67, %p68
      %p70 = scmp.le.s32.totalorder 1, %s10
      %p71 = scmp.lt.s32.totalorder %s10, 3
      %p72 = pnand %p70, %p71
      %p73 = pneg %p72
      // Predicated region
      $region9: #{tpu_custom_call.1} parent=5 // pred_check
        _
      $region10: #{tpu_custom_call.1} parent=5 // pred_check_branch
        %75 = sbr.rel (%p72) target = $region12
      $region11: #{tpu_custom_call.1} parent=5 // pred_region
        %s76 = ssub.s32 %s10, 1
      $region12: #{tpu_custom_call.1} parent=5 // pred_fallthru
        _
      %p77 = scmp.lt.s32.totalorder %s10, 2
      // Predicated region
      $region13: #{tpu_custom_call.1} parent=5 // pred_check
        %p78 = pneg %p77
      $region14: #{tpu_custom_call.1} parent=5 // pred_check_branch
        %80 = sbr.rel (%p78) target = $region16
      $region15: #{tpu_custom_call.1} parent=5 // pred_region
        // Predicated region
        $region17: #{tpu_custom_call.1} parent=15 // pred_check
          %p81 = pneg %p30
        $region18: #{tpu_custom_call.1} parent=15 // pred_check_branch
          %83 = sbr.rel (%p81) target = $region20
        $region19: #{tpu_custom_call.1} parent=15 // pred_region
          %s84 = sand.u32 %s20, 1
          %s85 = scalar_lea.sflag [#allocation3], %s84
          %s86 = sand.u32 %s20, 1
          %s87 = smul.addr %s86, 32
          %s88 = scalar_lea.vmem [#allocation2], %s87
          %s89 = smul.u32 4, %s10
          %s90 = ssub.s32 5, %s89
          %p91 = scmp.lt.s32.totalorder %s90, 4
          %s92 = scalar_select %p91, %s90, 4
          %s93 = smul.u32 128, %s92
          %s95 = ssub.s32 512, %s93
          %96 = vsyncadd %s85, %s95
          %p97 = scmp.ne.s32.totalorder 0, %s93
          %s98 = smul.addr %s89, 128
          %s99 = scalar_lea.hbm %s0, %s98
          %s100 = smul.u32 8, %s92
          %s101 = sshll.u32 %s88, 4
          %s102 = int_to_ptr.vmem [resolvable:$true] %s101
          %s103 = sshll.u32 %s100, 4
          %107 = dma.hbm_to_vmem [thread:$0]  (%p97), %s99, %s103, %s102, %s85, 128, 128, 8
        $region20: #{tpu_custom_call.1} parent=15 // pred_fallthru
          _
      $region16: #{tpu_custom_call.1} parent=5 // pred_fallthru
        _
      %p108 = scmp.le.s32.totalorder 1, %s10
      %p109 = scmp.lt.s32.totalorder %s10, 3
      %p110 = pnand %p108, %p109
      %p111 = pneg %p110
      // Predicated region
      $region21: #{tpu_custom_call.1} parent=5 // pred_check
        _
      $region22: #{tpu_custom_call.1} parent=5 // pred_check_branch
        %113 = sbr.rel (%p110) target = $region24
      $region23: #{tpu_custom_call.1} parent=5 // pred_region
        %s114 = ssub.s32 %s10, 1
        %s115 = sand.u32 %s23, 1
        %s116 = scalar_lea.sflag [#allocation3], %s115
        %s117 = sand.u32 %s23, 1
        %s118 = smul.addr %s117, 32
        %s119 = scalar_lea.vmem [#allocation2], %s118
        // Predicated region
        $region25: #{tpu_custom_call.1} parent=23 // pred_check
          %p120 = pneg %p36
        $region26: #{tpu_custom_call.1} parent=23 // pred_check_branch
          %122 = sbr.rel (%p120) target = $region28
        $region27: #{tpu_custom_call.1} parent=23 // pred_region
          %123 = dma.done %s116, 512
        $region28: #{tpu_custom_call.1} parent=23 // pred_fallthru
          _
        %s124 = sand.u32 %s23, 1
        %s125 = scalar_lea.sflag [#allocation3], %s124
        %s126 = sand.u32 %s23, 1
        %s127 = smul.addr %s126, 32
        %s128 = scalar_lea.vmem [#allocation2], %s127
        %p129 = pneg %p36
        %p130 = pneg %p33
        %p131 = pneg %p62
        %p132 = pneg %p59
        %s133 = sand.u32 %s49, 1
        %s134 = sand.u32 %s49, 1
        %s135 = smul.addr %s134, 32
        %s136 = scalar_lea.vmem [#allocation4], %s135
        %s137 = smul.u32 4, %s15
        %s138 = ssub.s32 5, %s137
        %p139 = scmp.lt.s32.totalorder %s138, 4
        %s140 = scalar_select %p139, %s138, 4
        %s141 = smul.u32 128, %s140
        %s142 = smul.u32 4, %s15
        %s143 = ssub.s32 5, %s142
        %p144 = scmp.lt.s32.totalorder %s143, 4
        %s145 = scalar_select %p144, %s143, 4
        %s146 = smul.u32 128, %s145
        %v147 = vld [vmem:[%s119] sm:$0xff]
        %v148 = vld [vmem:[%s119 + $0x8] sm:$0xff]
        %v149 = vld [vmem:[%s119 + $0x10] sm:$0xff]
        %v150 = vld [vmem:[%s119 + $0x18] sm:$0xff]
        %vm151 = vcmp.gt.f32.partialorder %v147, 0.0
        %vm152 = vcmp.gt.f32.partialorder %v148, 0.0
        %vm153 = vcmp.gt.f32.partialorder %v149, 0.0
        %vm154 = vcmp.gt.f32.partialorder %v150, 0.0
        %v155 = vsel %vm151, 1, 0
        %v156 = vsel %vm152, 1, 0
        %v157 = vsel %vm153, 1, 0
        %v158 = vsel %vm154, 1, 0
        %159 = vst [vmem:[%s136] sm:$0xff] %v155
        %160 = vst [vmem:[%s136 + $0x8] sm:$0xff] %v156
        %161 = vst [vmem:[%s136 + $0x10] sm:$0xff] %v157
        %162 = vst [vmem:[%s136 + $0x18] sm:$0xff] %v158
        %s163 = sand.u32 %s49, 1
        %s164 = sand.u32 %s49, 1
        %s165 = smul.addr %s164, 32
        %s166 = scalar_lea.vmem [#allocation4], %s165
        // Predicated region
        $region29: #{tpu_custom_call.1} parent=23 // pred_check
          %p167 = pneg %p59
        $region30: #{tpu_custom_call.1} parent=23 // pred_check_branch
          %169 = sbr.rel (%p167) target = $region32
        $region31: #{tpu_custom_call.1} parent=23 // pred_region
          %s170 = smul.u32 4, %s15
          %s171 = ssub.s32 5, %s170
          %p172 = scmp.lt.s32.totalorder %s171, 4
          %s173 = scalar_select %p172, %s171, 4
          %s174 = smul.u32 128, %s173
          %p175 = scmp.ne.s32.totalorder 0, %s174
          %s176 = smul.addr %s170, 8
          %s177 = scalar_lea.vmem %s1, %s176
          // Predicated region
          $region33: #{tpu_custom_call.1} parent=31 // pred_check
            %p178 = pneg %p175
          $region34: #{tpu_custom_call.1} parent=31 // pred_check_branch
            %180 = sbr.rel (%p178) target = $region36
          $region35: #{tpu_custom_call.1} parent=31 // pred_region
            // Predicated region
            $region37: #{tpu_custom_call.1} parent=35 // pred_check
              _
            $region38: #{tpu_custom_call.1} parent=35 // pred_check_branch
              %182 = sbr.rel (0) target = $region40
            $region39: #{tpu_custom_call.1} parent=35 // pred_region
              // Predicated region
              $region59: #{tpu_custom_call.1} parent=39 // pred_check
                _
              $region60: #{tpu_custom_call.1} parent=39 // pred_check_branch
                %238 = sbr.rel (0) target = $region62
              $region61: #{tpu_custom_call.1} parent=39 // pred_region
                %s239 = sshrl.u32 %s173, 2
                // While loop
                $region63: #{tpu_custom_call.1} parent=61 // loop_pre_header
                  _
                $region64: #{tpu_custom_call.1} parent=61 // loop_header
                  %s241 = sphi 0, %s243
                  %p242 = scmp.ge.s32.totalorder %s241, %s239
                  %s246 = sphi 0, %s259
                  %s247 = sphi %s166, %s262
                  %s248 = sphi %s177, %s263
                $region65: #{tpu_custom_call.1} parent=61 // loop_header_branch
                  %245 = sbr.rel (%p242) target = $region69
                $region66: #{tpu_custom_call.1} parent=61 // loop_body
                  %v249 = vld [vmem:[%s247] sm:$0xff]
                  %250 = vst [vmem:[%s248] sm:$0xff] %v249
                  %v251 = vld [vmem:[%s247 + $0x8] sm:$0xff]
                  %252 = vst [vmem:[%s248 + $0x8] sm:$0xff] %v251
                  %v253 = vld [vmem:[%s247 + $0x10] sm:$0xff]
                  %254 = vst [vmem:[%s248 + $0x10] sm:$0xff] %v253
                  %v255 = vld [vmem:[%s247 + $0x18] sm:$0xff]
                  %256 = vst [vmem:[%s248 + $0x18] sm:$0xff] %v255
                  %s257 = sadd.s32 1, %s246
                  %p258 = scmp.ge.s32.totalorder %s257, %s239
                  %s259 = scalar_select %p258, 0, %s257
                  %s260 = smul.u32 %s259, 32
                  %s261 = smul.u32 %s259, 32
                  %s262 = scalar_lea.vmem %s166, %s260 [#allocation4]
                  %s263 = scalar_lea.vmem %s177, %s261
                $region67: #{tpu_custom_call.1} parent=61 // loop_footer
                  %s243 = sadd.s32 %s241, 1
                $region68: #{tpu_custom_call.1} parent=61 // loop_footer_branch
                  %240 = sbr.rel target = $region64
                $region69: #{tpu_custom_call.1} parent=61 // loop_exit
                  _
                %s264 = sshrl.u32 %s173, 2
                %s265 = sand.u32 %s173, 3
                %s266 = smul.u32 %s264, 4
                %s267 = smul.u32 8, %s266
                %s268 = scalar_lea.vmem %s166, %s267 [#allocation4]
                %s269 = smul.u32 8, %s266
                %s270 = scalar_lea.vmem %s177, %s269
                // While loop
                $region70: #{tpu_custom_call.1} parent=61 // loop_pre_header
                  _
                $region71: #{tpu_custom_call.1} parent=61 // loop_header
                  %s272 = sphi 0, %s274
                  %p273 = scmp.ge.s32.totalorder %s272, %s265
                  %s277 = sphi 0, %s284
                  %s278 = sphi %s268, %s287
                  %s279 = sphi %s270, %s288
                $region72: #{tpu_custom_call.1} parent=61 // loop_header_branch
                  %276 = sbr.rel (%p273) target = $region76
                $region73: #{tpu_custom_call.1} parent=61 // loop_body
                  %v280 = vld [vmem:[%s278] sm:$0xff]
                  %281 = vst [vmem:[%s279] sm:$0xff] %v280
                  %s282 = sadd.s32 1, %s277
                  %p283 = scmp.ge.s32.totalorder %s282, %s265
                  %s284 = scalar_select %p283, 0, %s282
                  %s285 = smul.u32 %s284, 8
                  %s286 = smul.u32 %s284, 8
                  %s287 = scalar_lea.vmem %s268, %s285 [#allocation4]
                  %s288 = scalar_lea.vmem %s270, %s286
                $region74: #{tpu_custom_call.1} parent=61 // loop_footer
                  %s274 = sadd.s32 %s272, 1
                $region75: #{tpu_custom_call.1} parent=61 // loop_footer_branch
                  %271 = sbr.rel target = $region71
                $region76: #{tpu_custom_call.1} parent=61 // loop_exit
                  _
              $region62: #{tpu_custom_call.1} parent=39 // pred_fallthru
                _
              // Predicated region
              $region77: #{tpu_custom_call.1} parent=39 // pred_check
                _
              $region78: #{tpu_custom_call.1} parent=39 // pred_check_branch
                %290 = sbr.rel target = $region80
              $region79: #{tpu_custom_call.1} parent=39 // pred_region
                _
              $region80: #{tpu_custom_call.1} parent=39 // pred_fallthru
                _
            $region40: #{tpu_custom_call.1} parent=35 // pred_fallthru
              _
            // Predicated region
            $region41: #{tpu_custom_call.1} parent=35 // pred_check
              _
            $region42: #{tpu_custom_call.1} parent=35 // pred_check_branch
              %184 = sbr.rel target = $region44
            $region43: #{tpu_custom_call.1} parent=35 // pred_region
              %s186 = ssub.s32 256, 1
              %s187 = sshrl.u32 %s173, 2
              // While loop
              $region45: #{tpu_custom_call.1} parent=43 // loop_pre_header
                _
              $region46: #{tpu_custom_call.1} parent=43 // loop_header
                %s189 = sphi 0, %s191
                %p190 = scmp.ge.s32.totalorder %s189, %s187
                %s194 = sphi 0, %s207
                %s195 = sphi %s166, %s210
                %s196 = sphi %s177, %s211
              $region47: #{tpu_custom_call.1} parent=43 // loop_header_branch
                %193 = sbr.rel (%p190) target = $region51
              $region48: #{tpu_custom_call.1} parent=43 // loop_body
                %v197 = vld [vmem:[%s195] sm:%s186]
                %198 = vst [vmem:[%s196] sm:%s186] %v197
                %v199 = vld [vmem:[%s195 + $0x8] sm:%s186]
                %200 = vst [vmem:[%s196 + $0x8] sm:%s186] %v199
                %v201 = vld [vmem:[%s195 + $0x10] sm:%s186]
                %202 = vst [vmem:[%s196 + $0x10] sm:%s186] %v201
                %v203 = vld [vmem:[%s195 + $0x18] sm:%s186]
                %204 = vst [vmem:[%s196 + $0x18] sm:%s186] %v203
                %s205 = sadd.s32 1, %s194
                %p206 = scmp.ge.s32.totalorder %s205, %s187
                %s207 = scalar_select %p206, 0, %s205
                %s208 = smul.u32 %s207, 32
                %s209 = smul.u32 %s207, 32
                %s210 = scalar_lea.vmem %s166, %s208 [#allocation4]
                %s211 = scalar_lea.vmem %s177, %s209
              $region49: #{tpu_custom_call.1} parent=43 // loop_footer
                %s191 = sadd.s32 %s189, 1
              $region50: #{tpu_custom_call.1} parent=43 // loop_footer_branch
                %188 = sbr.rel target = $region46
              $region51: #{tpu_custom_call.1} parent=43 // loop_exit
                _
              %s212 = sshrl.u32 %s173, 2
              %s213 = sand.u32 %s173, 3
              %s214 = smul.u32 %s212, 4
              %s215 = smul.u32 8, %s214
              %s216 = scalar_lea.vmem %s166, %s215 [#allocation4]
              %s217 = smul.u32 8, %s214
              %s218 = scalar_lea.vmem %s177, %s217
              // While loop
              $region52: #{tpu_custom_call.1} parent=43 // loop_pre_header
                _
              $region53: #{tpu_custom_call.1} parent=43 // loop_header
                %s220 = sphi 0, %s222
                %p221 = scmp.ge.s32.totalorder %s220, %s213
                %s225 = sphi 0, %s232
                %s226 = sphi %s216, %s235
                %s227 = sphi %s218, %s236
              $region54: #{tpu_custom_call.1} parent=43 // loop_header_branch
                %224 = sbr.rel (%p221) target = $region58
              $region55: #{tpu_custom_call.1} parent=43 // loop_body
                %v228 = vld [vmem:[%s226] sm:%s186]
                %229 = vst [vmem:[%s227] sm:%s186] %v228
                %s230 = sadd.s32 1, %s225
                %p231 = scmp.ge.s32.totalorder %s230, %s213
                %s232 = scalar_select %p231, 0, %s230
                %s233 = smul.u32 %s232, 8
                %s234 = smul.u32 %s232, 8
                %s235 = scalar_lea.vmem %s216, %s233 [#allocation4]
                %s236 = scalar_lea.vmem %s218, %s234
              $region56: #{tpu_custom_call.1} parent=43 // loop_footer
                %s222 = sadd.s32 %s220, 1
              $region57: #{tpu_custom_call.1} parent=43 // loop_footer_branch
                %219 = sbr.rel target = $region53
              $region58: #{tpu_custom_call.1} parent=43 // loop_exit
                _
            $region44: #{tpu_custom_call.1} parent=35 // pred_fallthru
              _
          $region36: #{tpu_custom_call.1} parent=31 // pred_fallthru
            _
          %291 = vnop
        $region32: #{tpu_custom_call.1} parent=23 // pred_fallthru
          _
      $region24: #{tpu_custom_call.1} parent=5 // pred_fallthru
        _
      %p292 = scmp.le.s32.totalorder 2, %s10
      // Predicated region
      $region81: #{tpu_custom_call.1} parent=5 // pred_check
        %p293 = pneg %p292
      $region82: #{tpu_custom_call.1} parent=5 // pred_check_branch
        %295 = sbr.rel (%p293) target = $region84
      $region83: #{tpu_custom_call.1} parent=5 // pred_region
        %s296 = ssub.s32 %s10, 2
        // Predicated region
        $region85: #{tpu_custom_call.1} parent=83 // pred_check
          %p297 = pneg %p65
        $region86: #{tpu_custom_call.1} parent=83 // pred_check_branch
          %299 = sbr.rel (%p297) target = $region88
        $region87: #{tpu_custom_call.1} parent=83 // pred_region
          %s300 = sand.u32 %s50, 1
          %s301 = sand.u32 %s50, 1
          %s302 = smul.addr %s301, 32
          %s303 = scalar_lea.vmem [#allocation4], %s302
        $region88: #{tpu_custom_call.1} parent=83 // pred_fallthru
          _
      $region84: #{tpu_custom_call.1} parent=5 // pred_fallthru
        _
    $region6: #{tpu_custom_call.1} parent=1 // loop_footer
      %s14 = sadd.s32 1, %s10
    $region7: #{tpu_custom_call.1} parent=1 // loop_footer_branch
      %9 = sbr.rel target = $region3
    $region8: #{tpu_custom_call.1} parent=1 // loop_exit
      _
    %304 = vsyncpa [#allocation3], 1
    %s305 = scalar_lea.sflag [#allocation3], 1
    %306 = vsyncpa %s305, 1

// kernel: _forward_jit.1
$region0: #{_forward_jit.1}
  #allocation0 [shape = 'u32[]', space=smem, size = 0x4, offset = 0x4, fixed_abs, tag = 'smem constant byte address 0x4 - core index']
  #allocation1 [shape = 'u32[144,128]{1,0:T(1,128)}', space=vmem, size = 0x12000, scoped, tag = 'internal scratch']
  %s0 = inlined_call_operand.vmem [shape: f32[16,128], index: 0, kind: input, shape index: {}]
  %s1 = inlined_call_operand.vmem [shape: f32[16,128], index: 1, kind: input, shape index: {}]
  %s2 = inlined_call_operand.vmem [shape: f32[16,128], index: 2, kind: output, shape index: {0}]
  %s3 = inlined_call_operand.vmem [shape: f32[16,128], index: 3, kind: output, shape index: {1}]
  %s4 = inlined_call_operand.vmem [shape: f32[16,128], index: 4, kind: output, shape index: {2}]
  %s5 = inlined_call_operand.vmem [shape: f32[16,128], index: 5, kind: output, shape index: {3}]
  %s6 = inlined_call_operand.vmem [shape: s8[16,128], index: 6, kind: output, shape index: {4}]
  %s7 = inlined_call_operand.vmem [shape: s8[16,128], index: 7, kind: output, shape index: {5}]
  %8 = xla_tuple %s2, %s3, %s4, %s5, %s6, %s7
  %s9 = sld [smem:[#allocation0]]
  $region58: #{_forward_jit.1} parent=0
    _
  %s11 = ssub.s32 1, %s9
  %s12 = scalar_select 0, %s11, %s9
  // Predicated region
  $region2: #{_forward_jit.1} parent=0 // pred_check
    _
  $region3: #{_forward_jit.1} parent=0 // pred_check_branch
    %14 = sbr.rel (0) target = $region5
  $region4: #{_forward_jit.1} parent=0 // pred_region
    _
  $region5: #{_forward_jit.1} parent=0 // pred_fallthru
    _
  // Predicated region
  $region6: #{_forward_jit.1} parent=0 // pred_check
    _
  $region7: #{_forward_jit.1} parent=0 // pred_check_branch
    %16 = sbr.rel (0) target = $region9
  $region8: #{_forward_jit.1} parent=0 // pred_region
    _
  $region9: #{_forward_jit.1} parent=0 // pred_fallthru
    _
  %v19 = vld [vmem:[%s0] sm:$0xff]
  %v20 = vld [vmem:[%s0 + $0x8] sm:$0xff]
  %v21 = vld [vmem:[%s1] sm:$0xff]
  %v22 = vld [vmem:[%s1 + $0x8] sm:$0xff]
  %v23 = vadd.f32 %v19, %v21
  %v24 = vadd.f32 %v20, %v22
  %25 = vst [vmem:[%s2] sm:$0xff] %v23
  %26 = vst [vmem:[%s2 + $0x8] sm:$0xff] %v24
  %v27 = vsub.f32 %v19, %v21
  %v28 = vsub.f32 %v20, %v22
  %29 = vst [vmem:[%s3] sm:$0xff] %v27
  %30 = vst [vmem:[%s3 + $0x8] sm:$0xff] %v28
  %v31 = vmul.f32 %v19, %v21
  %v32 = vmul.f32 %v20, %v22
  %33 = vst [vmem:[%s4] sm:$0xff] %v31
  %34 = vst [vmem:[%s4 + $0x8] sm:$0xff] %v32
  %v35 = vadd.f32 %v21, 1e-08
  %v36 = vadd.f32 %v22, 1e-08
  %v37 = vrcp.pop %v35
  %v38 = vmul.f32 %v19, %v37
  %v39 = vrcp.pop %v36
  %v40 = vmul.f32 %v20, %v39
  %41 = vst [vmem:[%s5] sm:$0xff] %v38
  %42 = vst [vmem:[%s5 + $0x8] sm:$0xff] %v40
  %vm43 = vcmp.gt.f32.partialorder %v19, %v21
  %vm44 = vcmp.gt.f32.partialorder %v20, %v22
  %vm45 = vmpackc.low %vm44, %vm43
  %vm46 = vmpackc.even %vm45, %vm45
  %v47 = vsel %vm46, 16843009, 0
  %v48 = vunpack.c.0.s8 %v47
  %v49 = vunpack.c.1.s8 %v47
  %v50 = vpack.c.b16 %v48, %v48
  %v51 = vpack.c.b8 %v50, %v50
  %v52 = vpack.c.b16 %v49, %v49
  %v53 = vpack.c.b8 %v52, %v52
  %54 = vst [vmem:[%s6] sm:$0x3] %v51
  %55 = vst [vmem:[%s6 + $0x2] sm:$0x3] %v53
  %vm56 = vcmp.lt.f32.partialorder %v19, %v21
  %vm57 = vcmp.lt.f32.partialorder %v20, %v22
  %vm58 = vmpackc.low %vm57, %vm56
  %vm59 = vmpackc.even %vm58, %vm58
  %v60 = vsel %vm59, 16843009, 0
  %v61 = vunpack.c.0.s8 %v60
  %v62 = vunpack.c.1.s8 %v60
  %v63 = vpack.c.b16 %v61, %v61
  %v64 = vpack.c.b8 %v63, %v63
  %v65 = vpack.c.b16 %v62, %v62
  %v66 = vpack.c.b8 %v65, %v65
  %67 = vst [vmem:[%s7] sm:$0x3] %v64
  %68 = vst [vmem:[%s7 + $0x2] sm:$0x3] %v66
  // Predicated region
  $region10: #{_forward_jit.1} parent=0 // pred_check
    _
  $region11: #{_forward_jit.1} parent=0 // pred_check_branch
    %70 = sbr.rel (0) target = $region13
  $region12: #{_forward_jit.1} parent=0 // pred_region
    _
  $region13: #{_forward_jit.1} parent=0 // pred_fallthru
    _
  // Predicated region
  $region14: #{_forward_jit.1} parent=0 // pred_check
    _
  $region15: #{_forward_jit.1} parent=0 // pred_check_branch
    %72 = sbr.rel (0) target = $region17
  $region16: #{_forward_jit.1} parent=0 // pred_region
    _
  $region17: #{_forward_jit.1} parent=0 // pred_fallthru
    _
  // Predicated region
  $region18: #{_forward_jit.1} parent=0 // pred_check
    _
  $region19: #{_forward_jit.1} parent=0 // pred_check_branch
    %74 = sbr.rel (0) target = $region21
  $region20: #{_forward_jit.1} parent=0 // pred_region
    _
  $region21: #{_forward_jit.1} parent=0 // pred_fallthru
    _
  // Predicated region
  $region22: #{_forward_jit.1} parent=0 // pred_check
    _
  $region23: #{_forward_jit.1} parent=0 // pred_check_branch
    %76 = sbr.rel (0) target = $region25
  $region24: #{_forward_jit.1} parent=0 // pred_region
    _
  $region25: #{_forward_jit.1} parent=0 // pred_fallthru
    _
  // Predicated region
  $region26: #{_forward_jit.1} parent=0 // pred_check
    _
  $region27: #{_forward_jit.1} parent=0 // pred_check_branch
    %78 = sbr.rel (0) target = $region29
  $region28: #{_forward_jit.1} parent=0 // pred_region
    _
  $region29: #{_forward_jit.1} parent=0 // pred_fallthru
    _
  // Predicated region
  $region30: #{_forward_jit.1} parent=0 // pred_check
    _
  $region31: #{_forward_jit.1} parent=0 // pred_check_branch
    %80 = sbr.rel (0) target = $region33
  $region32: #{_forward_jit.1} parent=0 // pred_region
    _
  $region33: #{_forward_jit.1} parent=0 // pred_fallthru
    _
  // Predicated region
  $region34: #{_forward_jit.1} parent=0 // pred_check
    _
  $region35: #{_forward_jit.1} parent=0 // pred_check_branch
    %82 = sbr.rel (0) target = $region37
  $region36: #{_forward_jit.1} parent=0 // pred_region
    _
  $region37: #{_forward_jit.1} parent=0 // pred_fallthru
    _
  // Predicated region
  $region38: #{_forward_jit.1} parent=0 // pred_check
    _
  $region39: #{_forward_jit.1} parent=0 // pred_check_branch
    %84 = sbr.rel (0) target = $region41
  $region40: #{_forward_jit.1} parent=0 // pred_region
    _
  $region41: #{_forward_jit.1} parent=0 // pred_fallthru
    _
  // Predicated region
  $region42: #{_forward_jit.1} parent=0 // pred_check
    _
  $region43: #{_forward_jit.1} parent=0 // pred_check_branch
    %86 = sbr.rel (0) target = $region45
  $region44: #{_forward_jit.1} parent=0 // pred_region
    _
  $region45: #{_forward_jit.1} parent=0 // pred_fallthru
    _
  // Predicated region
  $region46: #{_forward_jit.1} parent=0 // pred_check
    _
  $region47: #{_forward_jit.1} parent=0 // pred_check_branch
    %88 = sbr.rel (0) target = $region49
  $region48: #{_forward_jit.1} parent=0 // pred_region
    _
  $region49: #{_forward_jit.1} parent=0 // pred_fallthru
    _
  // Predicated region
  $region50: #{_forward_jit.1} parent=0 // pred_check
    _
  $region51: #{_forward_jit.1} parent=0 // pred_check_branch
    %90 = sbr.rel (0) target = $region53
  $region52: #{_forward_jit.1} parent=0 // pred_region
    _
  $region53: #{_forward_jit.1} parent=0 // pred_fallthru
    _
  // Predicated region
  $region54: #{_forward_jit.1} parent=0 // pred_check
    _
  $region55: #{_forward_jit.1} parent=0 // pred_check_branch
    %92 = sbr.rel (0) target = $region57
  $region56: #{_forward_jit.1} parent=0 // pred_region
    _
  $region57: #{_forward_jit.1} parent=0 // pred_fallthru
    _

</llo_original>
